<compile_context>
chip_gen: v7x
topology: tpu7x:2x2x1
jax: 0.10.0
libtpu: 0.0.40
codegen_flags: <defaults>
</compile_context>

<pallas_src>
import functools

import jax
import jax.numpy as jnp
from jax.experimental import pallas as pl
from jax.experimental.pallas import tpu as pltpu

_LANE = 128
_SUBLANE = 8
_BN_EPS = 1e-5
_LEAK = 0.2


def _round_up(n, m):
    return ((n + m - 1) // m) * m


def _mlp_kernel(x_ref, w1_ref, g_ref, beta_ref, w2_ref, b2_ref, o_ref,
                sum_ref, sumsq_ref, scale_ref, shift_ref, *, inv_n):
    """grid = (pass, batch_tile).

    pass 0: Linear1 per tile, accumulate BN batch sum / sum-of-squares.
    pass 1: recompute Linear1, normalize, LeakyReLU, Linear2, write tile.
    """
    p = pl.program_id(0)
    t = pl.program_id(1)

    # ---- Linear 1 (MXU, bf16 operands / f32 accumulate) ----
    # No bias: it is exactly cancelled by the training-mode BatchNorm below.
    x = x_ref[...].astype(jnp.bfloat16)
    h = jnp.dot(x, w1_ref[...], preferred_element_type=jnp.float32)

    @pl.when(p == 0)
    def _accumulate_stats():
        @pl.when(t == 0)
        def _init():
            sum_ref[...] = jnp.zeros_like(sum_ref)
            sumsq_ref[...] = jnp.zeros_like(sumsq_ref)

        sum_ref[...] += jnp.sum(h, axis=0, keepdims=True)
        sumsq_ref[...] += jnp.sum(h * h, axis=0, keepdims=True)

    @pl.when(p == 1)
    def _normalize_and_project():
        @pl.when(t == 0)
        def _finalize_stats():
            # Divide by the *true* batch size (zero-padded rows contribute 0).
            mean = sum_ref[...] * inv_n
            var = jnp.maximum(sumsq_ref[...] * inv_n - mean * mean, 0.0)
            scale = g_ref[...] * jax.lax.rsqrt(var + _BN_EPS)
            scale_ref[...] = scale
            shift_ref[...] = beta_ref[...] - mean * scale

        # BN with mean folded into the shift: one (N, hid) FMA, no diff pass.
        h_bn = h * scale_ref[...] + shift_ref[...]
        # LeakyReLU(0.2) on the VPU, f32.
        a = jnp.where(h_bn >= 0, h_bn, _LEAK * h_bn)
        # ---- Linear 2 (MXU, bf16 operands / f32 accumulate) ----
        y = jnp.dot(a.astype(jnp.bfloat16), w2_ref[...],
                    preferred_element_type=jnp.float32) + b2_ref[...]
        o_ref[...] = y.astype(o_ref.dtype)


def mlp_forward(x, w1, b1, gamma, beta, w2, b2, *, tile_m=512):
    """x: (N, in_feat); w1: (in_feat, hid); w2: (hid, out). Returns (N, out)."""
    N, in_feat = x.shape
    hid = w1.shape[1]
    out_feat = w2.shape[1]
    del b1  # Exactly cancelled by training-mode BatchNorm; not DMA'd at all.

    # Lane-dense padding of all feature dims to 128 multiples (zero padding is
    # exact through the whole pipeline: padded hidden columns stay identically
    # zero, padded gamma columns are zero, padded w2 rows are zero).
    in_p = _round_up(in_feat, _LANE)
    hid_p = _round_up(hid, _LANE)
    out_p = _round_up(out_feat, _LANE)

    # Batch tiling: second-to-last block dim must be a multiple of 8.
    tm = min(tile_m, _round_up(N, _SUBLANE))
    n_p = _round_up(N, tm)
    n_tiles = n_p // tm

    x_p = jnp.pad(x, ((0, n_p - N), (0, in_p - in_feat)))
    w1_p = jnp.pad(w1, ((0, in_p - in_feat), (0, hid_p - hid))).astype(jnp.bfloat16)
    g_p = jnp.pad(gamma, ((0, 0), (0, hid_p - hid)))
    beta_p = jnp.pad(beta, ((0, 0), (0, hid_p - hid)))
    w2_p = jnp.pad(w2, ((0, hid_p - hid), (0, out_p - out_feat))).astype(jnp.bfloat16)
    b2_p = jnp.pad(b2, ((0, 0), (0, out_p - out_feat)))

    kernel = functools.partial(_mlp_kernel, inv_n=1.0 / N)

    y_p = pl.pallas_call(
        kernel,
        out_shape=jax.ShapeDtypeStruct((n_p, out_p), jnp.float32),
        grid_spec=pltpu.PrefetchScalarGridSpec(
            num_scalar_prefetch=0,
            grid=(2, n_tiles),  # (pass, batch_tile); pass is the outer loop.
            in_specs=[
                # x tile: re-fetched (double-buffered) in both passes.
                pl.BlockSpec((tm, in_p), lambda p, t: (t, 0)),
                # Weights / BN params: constant index maps -> VMEM-resident.
                pl.BlockSpec((in_p, hid_p), lambda p, t: (0, 0)),
                pl.BlockSpec((1, hid_p), lambda p, t: (0, 0)),
                pl.BlockSpec((1, hid_p), lambda p, t: (0, 0)),
                pl.BlockSpec((hid_p, out_p), lambda p, t: (0, 0)),
                pl.BlockSpec((1, out_p), lambda p, t: (0, 0)),
            ],
            # During pass 0 (p == 0) the output block index is pinned to 0 so
            # no garbage tiles are written back; during pass 1 it tracks t.
            out_specs=pl.BlockSpec((tm, out_p), lambda p, t: (p * t, 0)),
            scratch_shapes=[
                pltpu.VMEM((1, hid_p), jnp.float32),  # batch sum
                pltpu.VMEM((1, hid_p), jnp.float32),  # batch sum of squares
                pltpu.VMEM((1, hid_p), jnp.float32),  # folded scale
                pltpu.VMEM((1, hid_p), jnp.float32),  # folded shift
            ],
        ),
        compiler_params=pltpu.CompilerParams(
            # Stats accumulate across tiles and pass 1 depends on pass 0, so
            # both axes must stay sequential.
            dimension_semantics=("arbitrary", "arbitrary"),
            # Budgeted for v7x's 64 MiB physical VMEM; well under v5e/v6e's 128.
            vmem_limit_bytes=48 * 1024 * 1024,
        ),
    )(x_p, w1_p, g_p, beta_p, w2_p, b2_p)

    return y_p[:N, :out_feat]


def reference_forward(x, w1, b1, gamma, beta, w2, b2):
    """Pure f32 reference matching the PyTorch module in training mode."""
    h = x @ w1 + b1
    mean = jnp.mean(h, axis=0, keepdims=True)
    var = jnp.mean((h - mean) ** 2, axis=0, keepdims=True)
    h = (h - mean) / jnp.sqrt(var + _BN_EPS) * gamma + beta
    a = jnp.where(h >= 0, h, _LEAK * h)
    return a @ w2 + b2


def reference_forward_bf16(x, w1, gamma, beta, w2, b2):
    """Reference mirroring the kernel's exact arithmetic (bf16 MXU operands,
    f32 accumulate, no Linear1 bias, sum/sumsq BN, folded scale/shift)."""
    h = jnp.dot(x.astype(jnp.bfloat16), w1.astype(jnp.bfloat16),
                preferred_element_type=jnp.float32)
    inv_n = 1.0 / h.shape[0]
    mean = jnp.sum(h, axis=0, keepdims=True) * inv_n
    var = jnp.maximum(jnp.sum(h * h, axis=0, keepdims=True) * inv_n - mean * mean, 0.0)
    scale = gamma * jax.lax.rsqrt(var + _BN_EPS)
    hb = h * scale + (beta - mean * scale)
    a = jnp.where(hb >= 0, hb, _LEAK * hb)
    return jnp.dot(a.astype(jnp.bfloat16), w2.astype(jnp.bfloat16),
                   preferred_element_type=jnp.float32) + b2


def _make_params(key, in_feat, hid_feat, out_feat):
    kw1, kb1, kg, kbt, kw2, kb2 = jax.random.split(key, 6)
    lim1 = 1.0 / (in_feat ** 0.5)
    w1 = jax.random.uniform(kw1, (in_feat, hid_feat), jnp.float32, -lim1, lim1)
    b1 = jax.random.uniform(kb1, (1, hid_feat), jnp.float32, -lim1, lim1)
    lim2 = 1.0 / (hid_feat ** 0.5)
    w2 = jax.random.uniform(kw2, (hid_feat, out_feat), jnp.float32, -lim2, lim2)
    b2 = jax.random.uniform(kb2, (1, out_feat), jnp.float32, -lim2, lim2)
    # PyTorch defaults are gamma=1, beta=0; use non-trivial values to exercise
    # the affine path (the references apply the same values).
    gamma = 1.0 + 0.1 * jax.random.normal(kg, (1, hid_feat), jnp.float32)
    beta = 0.1 * jax.random.normal(kbt, (1, hid_feat), jnp.float32)
    return w1, b1, gamma, beta, w2, b2


def _check(y, x, w1, b1, gamma, beta, w2, b2):
    y_bf16 = reference_forward_bf16(x, w1, gamma, beta, w2, b2)
    assert jnp.allclose(y, y_bf16, atol=5e-3, rtol=5e-3), \
        "mismatch vs bf16-matched reference"
    y_f32 = reference_forward(x, w1, b1, gamma, beta, w2, b2)
    assert jnp.allclose(y, y_f32, atol=3e-2, rtol=3e-2), \
        "mismatch vs f32 reference"


if __name__ == "__main__":
    key = jax.random.PRNGKey(0)
    k1, k2, kx1, kx2 = jax.random.split(key, 4)

    fwd = jax.jit(mlp_forward, static_argnames=("tile_m",))

    # Case 1: small shapes, single batch tile.
    N, in_feat, hid_feat, out_feat = 8, 32, 64, 16
    x = jax.random.normal(kx1, (N, in_feat), dtype=jnp.float32)
    params = _make_params(k1, in_feat, hid_feat, out_feat)
    y = fwd(x, *params)
    jax.block_until_ready(y)
    assert y.shape == (N, out_feat)
    _check(y, x, *params)

    # Case 2: multiple batch tiles + ragged (zero-padded) last tile, to
    # exercise cross-tile BN stat accumulation with the true-N divisor.
    N2, in2, hid2, out2 = 40, 32, 64, 16
    x2 = jax.random.normal(kx2, (N2, in2), dtype=jnp.float32)
    params2 = _make_params(k2, in2, hid2, out2)
    y2 = fwd(x2, *params2, tile_m=16)  # 3 tiles of 16 rows, 8 padded rows
    jax.block_until_ready(y2)
    assert y2.shape == (N2, out2)
    _check(y2, x2, *params2)

    print("KERNEL_OK")
</pallas_src>

<mosaic_0001>
module attributes {stable_mosaic.version = 11 : i64} {
  func.func @_mlp_kernel(%arg0: i32, %arg1: i32, %arg2: memref<8x128xf32, #tpu.memory_space<vmem>>, %arg3: memref<128x128xbf16, #tpu.memory_space<vmem>>, %arg4: memref<1x128xf32, #tpu.memory_space<vmem>>, %arg5: memref<1x128xf32, #tpu.memory_space<vmem>>, %arg6: memref<128x128xbf16, #tpu.memory_space<vmem>>, %arg7: memref<1x128xf32, #tpu.memory_space<vmem>>, %arg8: memref<8x128xf32, #tpu.memory_space<vmem>>, %arg9: memref<1x128xf32, #tpu.memory_space<vmem>>, %arg10: memref<1x128xf32, #tpu.memory_space<vmem>>, %arg11: memref<1x128xf32, #tpu.memory_space<vmem>>, %arg12: memref<1x128xf32, #tpu.memory_space<vmem>>) attributes {dimension_semantics = [#tpu.dimension_semantics<arbitrary>, #tpu.dimension_semantics<arbitrary>], iteration_bounds = array<i64: 2, 1>, scalar_prefetch = 0 : i64, scratch_operands = 4 : i64, tpu.core_type = #tpu.core_type<tc>, window_params = [{transform_indices = @transform_0, window_bounds = array<i64: 8, 128>}, {pipeline_mode = #tpu.pipeline_mode<synchronous>, transform_indices = @transform_1, window_bounds = array<i64: 128, 128>}, {pipeline_mode = #tpu.pipeline_mode<synchronous>, transform_indices = @transform_2, window_bounds = array<i64: 1, 128>}, {pipeline_mode = #tpu.pipeline_mode<synchronous>, transform_indices = @transform_3, window_bounds = array<i64: 1, 128>}, {pipeline_mode = #tpu.pipeline_mode<synchronous>, transform_indices = @transform_4, window_bounds = array<i64: 128, 128>}, {pipeline_mode = #tpu.pipeline_mode<synchronous>, transform_indices = @transform_5, window_bounds = array<i64: 1, 128>}, {transform_indices = @transform_6, window_bounds = array<i64: 8, 128>}]} {
    %c0 = arith.constant 0 : index
    %c0_0 = arith.constant 0 : index
    %0 = vector.load %arg2[%c0, %c0_0] : memref<8x128xf32, #tpu.memory_space<vmem>>, vector<8x128xf32>
    %1 = arith.truncf %0 : vector<8x128xf32> to vector<8x128xbf16>
    %c0_1 = arith.constant 0 : index
    %c0_2 = arith.constant 0 : index
    %2 = vector.load %arg3[%c0_1, %c0_2] : memref<128x128xbf16, #tpu.memory_space<vmem>>, vector<128x128xbf16>
    %cst = arith.constant dense<0.000000e+00> : vector<8x128xf32>
    %3 = tpu.matmul %1, %2, %cst {dimension_numbers = #tpu.dot_dimension_numbers<[1], [0], [0], [1], [0, 0, 1, 1], [], []>} : vector<8x128xbf16>, vector<128x128xbf16>, vector<8x128xf32> -> vector<8x128xf32>
    %c0_i32 = arith.constant 0 : i32
    %4 = arith.cmpi eq, %arg0, %c0_i32 : i32
    %5 = arith.extui %4 : i1 to i32
    %c0_i32_3 = arith.constant 0 : i32
    %6 = arith.cmpi ne, %5, %c0_i32_3 : i32
    scf.if %6 {
      %c0_i32_5 = arith.constant 0 : i32
      %10 = arith.cmpi eq, %arg1, %c0_i32_5 : i32
      %11 = arith.extui %10 : i1 to i32
      %c0_i32_6 = arith.constant 0 : i32
      %12 = arith.cmpi ne, %11, %c0_i32_6 : i32
      scf.if %12 {
        %cst_17 = arith.constant 0.000000e+00 : f32
        %24 = vector.broadcast %cst_17 : f32 to vector<1x128xf32>
        %c0_18 = arith.constant 0 : index
        %c0_19 = arith.constant 0 : index
        %25 = vector.load %arg9[%c0_18, %c0_19] : memref<1x128xf32, #tpu.memory_space<vmem>>, vector<1x128xf32>
        tpu.vector_store %arg9[%c0_18, %c0_19], %24 {strides = array<i32>} : memref<1x128xf32, #tpu.memory_space<vmem>>, vector<1x128xf32>,
        %cst_20 = arith.constant 0.000000e+00 : f32
        %26 = vector.broadcast %cst_20 : f32 to vector<1x128xf32>
        %c0_21 = arith.constant 0 : index
        %c0_22 = arith.constant 0 : index
        %27 = vector.load %arg10[%c0_21, %c0_22] : memref<1x128xf32, #tpu.memory_space<vmem>>, vector<1x128xf32>
        tpu.vector_store %arg10[%c0_21, %c0_22], %26 {strides = array<i32>} : memref<1x128xf32, #tpu.memory_space<vmem>>, vector<1x128xf32>,
      } else {
      }
      %c0_7 = arith.constant 0 : index
      %c0_8 = arith.constant 0 : index
      %13 = vector.load %arg9[%c0_7, %c0_8] : memref<1x128xf32, #tpu.memory_space<vmem>>, vector<1x128xf32>
      %cst_9 = arith.constant dense<0.000000e+00> : vector<128xf32>
      %14 = vector.multi_reduction <add>, %3, %cst_9 [0] : vector<8x128xf32> to vector<128xf32>
      %15 = vector.shape_cast %14 : vector<128xf32> to vector<1x128xf32>
      %16 = arith.addf %13, %15 : vector<1x128xf32>
      %c0_10 = arith.constant 0 : index
      %c0_11 = arith.constant 0 : index
      %17 = vector.load %arg9[%c0_10, %c0_11] : memref<1x128xf32, #tpu.memory_space<vmem>>, vector<1x128xf32>
      tpu.vector_store %arg9[%c0_10, %c0_11], %16 {strides = array<i32>} : memref<1x128xf32, #tpu.memory_space<vmem>>, vector<1x128xf32>,
      %c0_12 = arith.constant 0 : index
      %c0_13 = arith.constant 0 : index
      %18 = vector.load %arg10[%c0_12, %c0_13] : memref<1x128xf32, #tpu.memory_space<vmem>>, vector<1x128xf32>
      %19 = arith.mulf %3, %3 : vector<8x128xf32>
      %cst_14 = arith.constant dense<0.000000e+00> : vector<128xf32>
      %20 = vector.multi_reduction <add>, %19, %cst_14 [0] : vector<8x128xf32> to vector<128xf32>
      %21 = vector.shape_cast %20 : vector<128xf32> to vector<1x128xf32>
      %22 = arith.addf %18, %21 : vector<1x128xf32>
      %c0_15 = arith.constant 0 : index
      %c0_16 = arith.constant 0 : index
      %23 = vector.load %arg10[%c0_15, %c0_16] : memref<1x128xf32, #tpu.memory_space<vmem>>, vector<1x128xf32>
      tpu.vector_store %arg10[%c0_15, %c0_16], %22 {strides = array<i32>} : memref<1x128xf32, #tpu.memory_space<vmem>>, vector<1x128xf32>,
    } else {
    }
    %c1_i32 = arith.constant 1 : i32
    %7 = arith.cmpi eq, %arg0, %c1_i32 : i32
    %8 = arith.extui %7 : i1 to i32
    %c0_i32_4 = arith.constant 0 : i32
    %9 = arith.cmpi ne, %8, %c0_i32_4 : i32
    scf.if %9 {
      %c0_i32_5 = arith.constant 0 : i32
      %10 = arith.cmpi eq, %arg1, %c0_i32_5 : i32
      %11 = arith.extui %10 : i1 to i32
      %c0_i32_6 = arith.constant 0 : i32
      %12 = arith.cmpi ne, %11, %c0_i32_6 : i32
      scf.if %12 {
        %c0_20 = arith.constant 0 : index
        %c0_21 = arith.constant 0 : index
        %31 = vector.load %arg9[%c0_20, %c0_21] : memref<1x128xf32, #tpu.memory_space<vmem>>, vector<1x128xf32>
        %cst_22 = arith.constant 1.250000e-01 : f32
        %32 = vector.broadcast %cst_22 : f32 to vector<1x128xf32>
        %33 = arith.mulf %31, %32 : vector<1x128xf32>
        %c0_23 = arith.constant 0 : index
        %c0_24 = arith.constant 0 : index
        %34 = vector.load %arg10[%c0_23, %c0_24] : memref<1x128xf32, #tpu.memory_space<vmem>>, vector<1x128xf32>
        %cst_25 = arith.constant 1.250000e-01 : f32
        %35 = vector.broadcast %cst_25 : f32 to vector<1x128xf32>
        %36 = arith.mulf %34, %35 : vector<1x128xf32>
        %37 = arith.mulf %33, %33 : vector<1x128xf32>
        %38 = arith.subf %36, %37 : vector<1x128xf32>
        %cst_26 = arith.constant 0.000000e+00 : f32
        %39 = vector.broadcast %cst_26 : f32 to vector<1x128xf32>
        %40 = arith.maximumf %38, %39 : vector<1x128xf32>
        %c0_27 = arith.constant 0 : index
        %c0_28 = arith.constant 0 : index
        %41 = vector.load %arg4[%c0_27, %c0_28] : memref<1x128xf32, #tpu.memory_space<vmem>>, vector<1x128xf32>
        %cst_29 = arith.constant 9.99999974E-6 : f32
        %42 = vector.broadcast %cst_29 : f32 to vector<1x128xf32>
        %43 = arith.addf %40, %42 : vector<1x128xf32>
        %44 = math.rsqrt %43 : vector<1x128xf32>
        %45 = arith.mulf %41, %44 : vector<1x128xf32>
        %c0_30 = arith.constant 0 : index
        %c0_31 = arith.constant 0 : index
        %46 = vector.load %arg11[%c0_30, %c0_31] : memref<1x128xf32, #tpu.memory_space<vmem>>, vector<1x128xf32>
        tpu.vector_store %arg11[%c0_30, %c0_31], %45 {strides = array<i32>} : memref<1x128xf32, #tpu.memory_space<vmem>>, vector<1x128xf32>,
        %c0_32 = arith.constant 0 : index
        %c0_33 = arith.constant 0 : index
        %47 = vector.load %arg5[%c0_32, %c0_33] : memref<1x128xf32, #tpu.memory_space<vmem>>, vector<1x128xf32>
        %48 = arith.mulf %33, %45 : vector<1x128xf32>
        %49 = arith.subf %47, %48 : vector<1x128xf32>
        %c0_34 = arith.constant 0 : index
        %c0_35 = arith.constant 0 : index
        %50 = vector.load %arg12[%c0_34, %c0_35] : memref<1x128xf32, #tpu.memory_space<vmem>>, vector<1x128xf32>
        tpu.vector_store %arg12[%c0_34, %c0_35], %49 {strides = array<i32>} : memref<1x128xf32, #tpu.memory_space<vmem>>, vector<1x128xf32>,
      } else {
      }
      %c0_7 = arith.constant 0 : index
      %c0_8 = arith.constant 0 : index
      %13 = vector.load %arg11[%c0_7, %c0_8] : memref<1x128xf32, #tpu.memory_space<vmem>>, vector<1x128xf32>
      %14 = vector.broadcast %13 : vector<1x128xf32> to vector<8x128xf32>
      %15 = arith.mulf %3, %14 : vector<8x128xf32>
      %c0_9 = arith.constant 0 : index
      %c0_10 = arith.constant 0 : index
      %16 = vector.load %arg12[%c0_9, %c0_10] : memref<1x128xf32, #tpu.memory_space<vmem>>, vector<1x128xf32>
      %17 = vector.broadcast %16 : vector<1x128xf32> to vector<8x128xf32>
      %18 = arith.addf %15, %17 : vector<8x128xf32>
      %cst_11 = arith.constant 0.000000e+00 : f32
      %19 = vector.broadcast %cst_11 : f32 to vector<8x128xf32>
      %20 = arith.cmpf oge, %18, %19 : vector<8x128xf32>
      %cst_12 = arith.constant 2.000000e-01 : f32
      %21 = vector.broadcast %cst_12 : f32 to vector<8x128xf32>
      %22 = arith.mulf %21, %18 : vector<8x128xf32>
      %23 = arith.select %20, %18, %22 : vector<8x128xi1>, vector<8x128xf32>
      %24 = arith.truncf %23 : vector<8x128xf32> to vector<8x128xbf16>
      %c0_13 = arith.constant 0 : index
      %c0_14 = arith.constant 0 : index
      %25 = vector.load %arg6[%c0_13, %c0_14] : memref<128x128xbf16, #tpu.memory_space<vmem>>, vector<128x128xbf16>
      %cst_15 = arith.constant dense<0.000000e+00> : vector<8x128xf32>
      %26 = tpu.matmul %24, %25, %cst_15 {dimension_numbers = #tpu.dot_dimension_numbers<[1], [0], [0], [1], [0, 0, 1, 1], [], []>} : vector<8x128xbf16>, vector<128x128xbf16>, vector<8x128xf32> -> vector<8x128xf32>
      %c0_16 = arith.constant 0 : index
      %c0_17 = arith.constant 0 : index
      %27 = vector.load %arg7[%c0_16, %c0_17] : memref<1x128xf32, #tpu.memory_space<vmem>>, vector<1x128xf32>
      %28 = vector.broadcast %27 : vector<1x128xf32> to vector<8x128xf32>
      %29 = arith.addf %26, %28 : vector<8x128xf32>
      %c0_18 = arith.constant 0 : index
      %c0_19 = arith.constant 0 : index
      %30 = vector.load %arg8[%c0_18, %c0_19] : memref<8x128xf32, #tpu.memory_space<vmem>>, vector<8x128xf32>
      tpu.vector_store %arg8[%c0_18, %c0_19], %29 {strides = array<i32>} : memref<8x128xf32, #tpu.memory_space<vmem>>, vector<8x128xf32>,
    } else {
    }
    return
  }
  func.func @transform_0(%arg0: i32, %arg1: i32) -> (i32, i32) {
    %c0_i32 = arith.constant 0 : i32
    %c0_i32_0 = arith.constant 0 : i32
    return %arg1, %c0_i32 : i32, i32
  }
  func.func @transform_1(%arg0: i32, %arg1: i32) -> (i32, i32) {
    %c0_i32 = arith.constant 0 : i32
    %c0_i32_0 = arith.constant 0 : i32
    %c0_i32_1 = arith.constant 0 : i32
    return %c0_i32, %c0_i32_0 : i32, i32
  }
  func.func @transform_2(%arg0: i32, %arg1: i32) -> (i32, i32) {
    %c0_i32 = arith.constant 0 : i32
    %c0_i32_0 = arith.constant 0 : i32
    %c0_i32_1 = arith.constant 0 : i32
    return %c0_i32, %c0_i32_0 : i32, i32
  }
  func.func @transform_3(%arg0: i32, %arg1: i32) -> (i32, i32) {
    %c0_i32 = arith.constant 0 : i32
    %c0_i32_0 = arith.constant 0 : i32
    %c0_i32_1 = arith.constant 0 : i32
    return %c0_i32, %c0_i32_0 : i32, i32
  }
  func.func @transform_4(%arg0: i32, %arg1: i32) -> (i32, i32) {
    %c0_i32 = arith.constant 0 : i32
    %c0_i32_0 = arith.constant 0 : i32
    %c0_i32_1 = arith.constant 0 : i32
    return %c0_i32, %c0_i32_0 : i32, i32
  }
  func.func @transform_5(%arg0: i32, %arg1: i32) -> (i32, i32) {
    %c0_i32 = arith.constant 0 : i32
    %c0_i32_0 = arith.constant 0 : i32
    %c0_i32_1 = arith.constant 0 : i32
    return %c0_i32, %c0_i32_0 : i32, i32
  }
  func.func @transform_6(%arg0: i32, %arg1: i32) -> (i32, i32) {
    %0 = arith.muli %arg0, %arg1 : i32
    %c0_i32 = arith.constant 0 : i32
    %c0_i32_0 = arith.constant 0 : i32
    return %0, %c0_i32 : i32, i32
  }
}

</mosaic_0001>

<llo_original>
// kernel: mlp_forward.1
$region0: #{mlp_forward.1}
  #allocation0 [shape = 'u32[]', space=smem, size = 0x4, offset = 0x4, fixed_abs, tag = 'smem constant byte address 0x4 - core index']
  #allocation1 [shape = 'u32[144,128]{1,0:T(1,128)}', space=vmem, size = 0x12000, scoped, tag = 'internal scratch']
  #allocation2 [shape = 'f32[1,128]{1,0:T(1,128)}', space=vmem, size = 0x200, scoped, tag = 'scratch operand']
  #allocation3 [shape = 'f32[1,128]{1,0:T(1,128)}', space=vmem, size = 0x200, scoped, tag = 'scratch operand']
  #allocation4 [shape = 'f32[1,128]{1,0:T(1,128)}', space=vmem, size = 0x200, scoped, tag = 'scratch operand']
  #allocation5 [shape = 'f32[1,128]{1,0:T(1,128)}', space=vmem, size = 0x200, scoped, tag = 'scratch operand']
  %s0 = inlined_call_operand.vmem [shape: f32[8,128], index: 0, kind: input, shape index: {}]
  %s1 = inlined_call_operand.vmem [shape: bf16[128,128], index: 1, kind: input, shape index: {}]
  %s2 = inlined_call_operand.vmem [shape: f32[1,128], index: 2, kind: input, shape index: {}]
  %s3 = inlined_call_operand.vmem [shape: f32[1,128], index: 3, kind: input, shape index: {}]
  %s4 = inlined_call_operand.vmem [shape: bf16[128,128], index: 4, kind: input, shape index: {}]
  %s5 = inlined_call_operand.vmem [shape: f32[1,128], index: 5, kind: input, shape index: {}]
  %s6 = inlined_call_operand.hbm [shape: f32[8,128], index: 6, kind: output, shape index: {}]
  %s7 = sld [smem:[#allocation0]]
  $region73: #{mlp_forward.1} parent=0
    _
  %s9 = ssub.s32 1, %s7
  %s10 = scalar_select 0, %s9, %s7
  $region1: #{mlp_forward.1} parent=0
    #allocation6 [shape = 'u8[8192]{0}', space=vmem, size = 0x2000, scoped, tag = 'output window, operand 0']
    #allocation7 [shape = 's32[2]{0}', space=sflag, size = 0x8, scoped, tag = 'scoped memory for mlp_forward.1']
    %11 = vsyncpa [#allocation7], 0
    %s12 = scalar_lea.sflag [#allocation7], 1
    %13 = vsyncpa %s12, 0
    loop: start=0, step=1, limit=4
    $region2: #{mlp_forward.1} parent=1 // loop_pre_header
      _
    $region3: #{mlp_forward.1} parent=1 // loop_header
      %s15 = sphi 0, %s19
      %p16 = scmp.ge.s32.totalorder %s15, 4
      %s22 = sphi 0, %s34
      %s23 = sphi 0, %s30
      %s24 = sphi 0, %s22
      %s25 = sphi 0, %s23
      %s26 = sphi 0, %s24
      %s27 = sphi 0, %s25
      %s37 = sphi 0, %s39
      %s40 = sphi 0, %s37
      %s41 = sphi 0, %s40
      %s57 = sphi 0, %s41
      %s61 = sphi 0, %s61
      %s63 = sphi 0, %s61
      %s64 = sphi 0, %s63
      %s78 = sphi 0, %s64
      %s82 = sphi 0, %s82
      %s84 = sphi 0, %s82
      %s85 = sphi 0, %s84
      %s99 = sphi 0, %s85
      %s103 = sphi 0, %s103
      %s105 = sphi 0, %s103
      %s106 = sphi 0, %s105
      %s120 = sphi 0, %s106
      %s124 = sphi 0, %s124
      %s126 = sphi 0, %s124
      %s127 = sphi 0, %s126
      %s141 = sphi 0, %s127
      %s145 = sphi 0, %s145
      %s147 = sphi 0, %s145
      %s148 = sphi 0, %s147
      %s162 = sphi 0, %s148
      %s170 = sphi 0, %s172
      %s173 = sphi 0, %s170
      %s174 = sphi 0, %s173
      %s190 = sphi 0, %s174
    $region4: #{mlp_forward.1} parent=1 // loop_header_branch
      %18 = sbr.rel (%p16) target = $region8
    $region5: #{mlp_forward.1} parent=1 // loop_body
      %s20 = ssub.s32 %s15, 1
      %s21 = ssub.s32 %s15, 2
      %s28 = sadd.s32 1, %s23
      %p29 = scmp.ge.s32.totalorder %s28, 1
      %s30 = scalar_select %p29, 0, %s28
      %s31 = sadd.s32 1, %s22
      %s32 = scalar_select %p29, %s31, %s22
      %p33 = scmp.ge.s32.totalorder %s32, 2
      %s34 = scalar_select %p33, 0, %s32
      %s35 = ssub.s32 %s23, %s30
      %p36 = scmp.eq.s32.totalorder %s35, 0
      %s38 = sadd.s32 %s37, 1
      %s39 = scalar_select %p36, %s37, %s38
      %p42 = pneg %p36
      %p43 = scmp.eq.s32.totalorder %s15, 1
      %p44 = por %p42, %p43
      %p45 = scmp.ne.s32.totalorder %s37, %s40
      %p46 = scmp.eq.s32.totalorder %s15, 0
      %p47 = por %p45, %p46
      %p48 = scmp.ne.s32.totalorder %s37, %s40
      %p49 = scmp.eq.s32.totalorder %s20, 1
      %p50 = por %p48, %p49
      %p51 = scmp.ne.s32.totalorder %s40, %s41
      %p52 = scmp.eq.s32.totalorder %s20, 0
      %p53 = por %p51, %p52
      %p54 = scmp.ne.s32.totalorder %s40, %s41
      %p55 = scmp.eq.s32.totalorder %s21, 1
      %p56 = por %p54, %p55
      %p58 = scmp.ne.s32.totalorder %s41, %s57
      %p59 = scmp.eq.s32.totalorder %s21, 0
      %p60 = por %p58, %p59
      %s62 = sadd.s32 %s61, 1
      %p65 = scmp.eq.s32.totalorder %s15, 1
      %p66 = scmp.ne.s32.totalorder %s61, %s63
      %p67 = scmp.eq.s32.totalorder %s15, 0
      %p68 = por %p66, %p67
      %p69 = scmp.ne.s32.totalorder %s61, %s63
      %p70 = scmp.eq.s32.totalorder %s20, 1
      %p71 = por %p69, %p70
      %p72 = scmp.ne.s32.totalorder %s63, %s64
      %p73 = scmp.eq.s32.totalorder %s20, 0
      %p74 = por %p72, %p73
      %p75 = scmp.ne.s32.totalorder %s63, %s64
      %p76 = scmp.eq.s32.totalorder %s21, 1
      %p77 = por %p75, %p76
      %p79 = scmp.ne.s32.totalorder %s64, %s78
      %p80 = scmp.eq.s32.totalorder %s21, 0
      %p81 = por %p79, %p80
      %s83 = sadd.s32 %s82, 1
      %p86 = scmp.eq.s32.totalorder %s15, 1
      %p87 = scmp.ne.s32.totalorder %s82, %s84
      %p88 = scmp.eq.s32.totalorder %s15, 0
      %p89 = por %p87, %p88
      %p90 = scmp.ne.s32.totalorder %s82, %s84
      %p91 = scmp.eq.s32.totalorder %s20, 1
      %p92 = por %p90, %p91
      %p93 = scmp.ne.s32.totalorder %s84, %s85
      %p94 = scmp.eq.s32.totalorder %s20, 0
      %p95 = por %p93, %p94
      %p96 = scmp.ne.s32.totalorder %s84, %s85
      %p97 = scmp.eq.s32.totalorder %s21, 1
      %p98 = por %p96, %p97
      %p100 = scmp.ne.s32.totalorder %s85, %s99
      %p101 = scmp.eq.s32.totalorder %s21, 0
      %p102 = por %p100, %p101
      %s104 = sadd.s32 %s103, 1
      %p107 = scmp.eq.s32.totalorder %s15, 1
      %p108 = scmp.ne.s32.totalorder %s103, %s105
      %p109 = scmp.eq.s32.totalorder %s15, 0
      %p110 = por %p108, %p109
      %p111 = scmp.ne.s32.totalorder %s103, %s105
      %p112 = scmp.eq.s32.totalorder %s20, 1
      %p113 = por %p111, %p112
      %p114 = scmp.ne.s32.totalorder %s105, %s106
      %p115 = scmp.eq.s32.totalorder %s20, 0
      %p116 = por %p114, %p115
      %p117 = scmp.ne.s32.totalorder %s105, %s106
      %p118 = scmp.eq.s32.totalorder %s21, 1
      %p119 = por %p117, %p118
      %p121 = scmp.ne.s32.totalorder %s106, %s120
      %p122 = scmp.eq.s32.totalorder %s21, 0
      %p123 = por %p121, %p122
      %s125 = sadd.s32 %s124, 1
      %p128 = scmp.eq.s32.totalorder %s15, 1
      %p129 = scmp.ne.s32.totalorder %s124, %s126
      %p130 = scmp.eq.s32.totalorder %s15, 0
      %p131 = por %p129, %p130
      %p132 = scmp.ne.s32.totalorder %s124, %s126
      %p133 = scmp.eq.s32.totalorder %s20, 1
      %p134 = por %p132, %p133
      %p135 = scmp.ne.s32.totalorder %s126, %s127
      %p136 = scmp.eq.s32.totalorder %s20, 0
      %p137 = por %p135, %p136
      %p138 = scmp.ne.s32.totalorder %s126, %s127
      %p139 = scmp.eq.s32.totalorder %s21, 1
      %p140 = por %p138, %p139
      %p142 = scmp.ne.s32.totalorder %s127, %s141
      %p143 = scmp.eq.s32.totalorder %s21, 0
      %p144 = por %p142, %p143
      %s146 = sadd.s32 %s145, 1
      %p149 = scmp.eq.s32.totalorder %s15, 1
      %p150 = scmp.ne.s32.totalorder %s145, %s147
      %p151 = scmp.eq.s32.totalorder %s15, 0
      %p152 = por %p150, %p151
      %p153 = scmp.ne.s32.totalorder %s145, %s147
      %p154 = scmp.eq.s32.totalorder %s20, 1
      %p155 = por %p153, %p154
      %p156 = scmp.ne.s32.totalorder %s147, %s148
      %p157 = scmp.eq.s32.totalorder %s20, 0
      %p158 = por %p156, %p157
      %p159 = scmp.ne.s32.totalorder %s147, %s148
      %p160 = scmp.eq.s32.totalorder %s21, 1
      %p161 = por %p159, %p160
      %p163 = scmp.ne.s32.totalorder %s148, %s162
      %p164 = scmp.eq.s32.totalorder %s21, 0
      %p165 = por %p163, %p164
      %s166 = smul.u32 %s22, %s23
      %s167 = smul.u32 %s34, %s30
      %s168 = ssub.s32 %s166, %s167
      %p169 = scmp.eq.s32.totalorder %s168, 0
      %s171 = sadd.s32 %s170, 1
      %s172 = scalar_select %p169, %s170, %s171
      %p175 = pneg %p169
      %p176 = scmp.eq.s32.totalorder %s15, 1
      %p177 = por %p175, %p176
      %p178 = scmp.ne.s32.totalorder %s170, %s173
      %p179 = scmp.eq.s32.totalorder %s15, 0
      %p180 = por %p178, %p179
      %p181 = scmp.ne.s32.totalorder %s170, %s173
      %p182 = scmp.eq.s32.totalorder %s20, 1
      %p183 = por %p181, %p182
      %p184 = scmp.ne.s32.totalorder %s173, %s174
      %p185 = scmp.eq.s32.totalorder %s20, 0
      %p186 = por %p184, %p185
      %p187 = scmp.ne.s32.totalorder %s173, %s174
      %p188 = scmp.eq.s32.totalorder %s21, 1
      %p189 = por %p187, %p188
      %p191 = scmp.ne.s32.totalorder %s174, %s190
      %p192 = scmp.eq.s32.totalorder %s21, 0
      %p193 = por %p191, %p192
      %p194 = scmp.le.s32.totalorder 1, %s15
      %p195 = scmp.lt.s32.totalorder %s15, 3
      %p196 = pnand %p194, %p195
      %p197 = pneg %p196
      // Predicated region
      $region9: #{mlp_forward.1} parent=5 // pred_check
        _
      $region10: #{mlp_forward.1} parent=5 // pred_check_branch
        %199 = sbr.rel (%p196) target = $region12
      $region11: #{mlp_forward.1} parent=5 // pred_region
        %s200 = ssub.s32 %s15, 1
        // Predicated region
        $region13: #{mlp_forward.1} parent=11 // pred_check
          %p201 = pneg %p53
        $region14: #{mlp_forward.1} parent=11 // pred_check_branch
          %203 = sbr.rel (%p201) target = $region16
        $region15: #{mlp_forward.1} parent=11 // pred_region
          %p204 = scmp.lt.s32.totalorder %s25, 0
          %s205 = scalar_select %p204, %s25, 0
          %s206 = smul.addr %s205, 8
          %s207 = scalar_lea.vmem %s0, %s206
        $region16: #{mlp_forward.1} parent=11 // pred_fallthru
          _
        // Predicated region
        $region17: #{mlp_forward.1} parent=11 // pred_check
          %p208 = pneg %p74
        $region18: #{mlp_forward.1} parent=11 // pred_check_branch
          %210 = sbr.rel (%p208) target = $region20
        $region19: #{mlp_forward.1} parent=11 // pred_region
          _
        $region20: #{mlp_forward.1} parent=11 // pred_fallthru
          _
        // Predicated region
        $region21: #{mlp_forward.1} parent=11 // pred_check
          %p211 = pneg %p95
        $region22: #{mlp_forward.1} parent=11 // pred_check_branch
          %213 = sbr.rel (%p211) target = $region24
        $region23: #{mlp_forward.1} parent=11 // pred_region
          _
        $region24: #{mlp_forward.1} parent=11 // pred_fallthru
          _
        // Predicated region
        $region25: #{mlp_forward.1} parent=11 // pred_check
          %p214 = pneg %p116
        $region26: #{mlp_forward.1} parent=11 // pred_check_branch
          %216 = sbr.rel (%p214) target = $region28
        $region27: #{mlp_forward.1} parent=11 // pred_region
          _
        $region28: #{mlp_forward.1} parent=11 // pred_fallthru
          _
        // Predicated region
        $region29: #{mlp_forward.1} parent=11 // pred_check
          %p217 = pneg %p137
        $region30: #{mlp_forward.1} parent=11 // pred_check_branch
          %219 = sbr.rel (%p217) target = $region32
        $region31: #{mlp_forward.1} parent=11 // pred_region
          _
        $region32: #{mlp_forward.1} parent=11 // pred_fallthru
          _
        // Predicated region
        $region33: #{mlp_forward.1} parent=11 // pred_check
          %p220 = pneg %p158
        $region34: #{mlp_forward.1} parent=11 // pred_check_branch
          %222 = sbr.rel (%p220) target = $region36
        $region35: #{mlp_forward.1} parent=11 // pred_region
          _
        $region36: #{mlp_forward.1} parent=11 // pred_fallthru
          _
      $region12: #{mlp_forward.1} parent=5 // pred_fallthru
        _
      %p223 = scmp.lt.s32.totalorder %s15, 2
      // Predicated region
      $region37: #{mlp_forward.1} parent=5 // pred_check
        %p224 = pneg %p223
      $region38: #{mlp_forward.1} parent=5 // pred_check_branch
        %226 = sbr.rel (%p224) target = $region40
      $region39: #{mlp_forward.1} parent=5 // pred_region
        _
      $region40: #{mlp_forward.1} parent=5 // pred_fallthru
        _
      %p227 = scmp.le.s32.totalorder 1, %s15
      %p228 = scmp.lt.s32.totalorder %s15, 3
      %p229 = pnand %p227, %p228
      %p230 = pneg %p229
      // Predicated region
      $region41: #{mlp_forward.1} parent=5 // pred_check
        _
      $region42: #{mlp_forward.1} parent=5 // pred_check_branch
        %232 = sbr.rel (%p229) target = $region44
      $region43: #{mlp_forward.1} parent=5 // pred_region
        %s233 = ssub.s32 %s15, 1
        %p234 = scmp.lt.s32.totalorder %s25, 0
        %s235 = scalar_select %p234, %s25, 0
        %s236 = smul.addr %s235, 8
        %s237 = scalar_lea.vmem %s0, %s236
        %p238 = pneg %p53
        %p239 = pneg %p50
        %p240 = pneg %p74
        %p241 = pneg %p71
        %p242 = pneg %p95
        %p243 = pneg %p92
        %p244 = pneg %p116
        %p245 = pneg %p113
        %p246 = pneg %p137
        %p247 = pneg %p134
        %p248 = pneg %p158
        %p249 = pneg %p155
        %p250 = pneg %p186
        %p251 = pneg %p183
        %s252 = sand.u32 %s173, 1
        %s253 = scalar_lea.sflag [#allocation7], %s252
        %s254 = sand.u32 %s173, 1
        %s255 = smul.addr %s254, 8
        %s256 = scalar_lea.vmem [#allocation6], %s255
        %p257 = scmp.lt.s32.totalorder %s25, 0
        %s258 = scalar_select %p257, %s25, 0
        %s259 = smul.addr %s258, 8
        %s260 = scalar_lea.vmem %s0, %s259
        %s261 = smul.u32 %s24, %s25
        %v263 = vld [vmem:[%s260] sm:$0xff]
        %v264 = vpack.c.bf16 %v263, %v263
        %v265 = vld [vmem:[%s1] sm:$0xf]
        %v266 = vld [vmem:[%s1 + $0x4] sm:$0xf]
        %v267 = vld [vmem:[%s1 + $0x8] sm:$0xf]
        %v268 = vld [vmem:[%s1 + $0xc] sm:$0xf]
        %v269 = vld [vmem:[%s1 + $0x10] sm:$0xf]
        %v270 = vld [vmem:[%s1 + $0x14] sm:$0xf]
        %v271 = vld [vmem:[%s1 + $0x18] sm:$0xf]
        %v272 = vld [vmem:[%s1 + $0x1c] sm:$0xf]
        %v273 = vld [vmem:[%s1 + $0x20] sm:$0xf]
        %v274 = vld [vmem:[%s1 + $0x24] sm:$0xf]
        %v275 = vld [vmem:[%s1 + $0x28] sm:$0xf]
        %v276 = vld [vmem:[%s1 + $0x2c] sm:$0xf]
        %v277 = vld [vmem:[%s1 + $0x30] sm:$0xf]
        %v278 = vld [vmem:[%s1 + $0x34] sm:$0xf]
        %v279 = vld [vmem:[%s1 + $0x38] sm:$0xf]
        %v280 = vld [vmem:[%s1 + $0x3c] sm:$0xf]
        %v297 = vunpack.c.l.b16 %v265
        %v298 = vunpack.c.l.b16 %v266
        %v299 = vunpack.c.l.b16 %v267
        %v300 = vunpack.c.l.b16 %v268
        %v301 = vunpack.c.l.b16 %v269
        %v302 = vunpack.c.l.b16 %v270
        %v303 = vunpack.c.l.b16 %v271
        %v304 = vunpack.c.l.b16 %v272
        %v305 = vunpack.c.l.b16 %v273
        %v306 = vunpack.c.l.b16 %v274
        %v307 = vunpack.c.l.b16 %v275
        %v308 = vunpack.c.l.b16 %v276
        %v309 = vunpack.c.l.b16 %v277
        %v310 = vunpack.c.l.b16 %v278
        %v311 = vunpack.c.l.b16 %v279
        %v312 = vunpack.c.l.b16 %v280
        %v313 = vpack.c.b16 %v298, %v297
        %v314 = vpack.c.b16 %v300, %v299
        %v315 = vpack.c.b16 %v302, %v301
        %v316 = vpack.c.b16 %v304, %v303
        %v317 = vpack.c.b16 %v306, %v305
        %v318 = vpack.c.b16 %v308, %v307
        %v319 = vpack.c.b16 %v310, %v309
        %v320 = vpack.c.b16 %v312, %v311
        %329 = vmatprep.subr.bf16.mxu0 0
        %330 = vmatpush1.bf16.msra.mxu0 %v313
        %331 = vmatprep.subr.bf16.mxu0 0
        %332 = vmatpush1.bf16.msra.mxu0 %v314
        %333 = vmatprep.subr.bf16.mxu0 0
        %334 = vmatpush1.bf16.msra.mxu0 %v315
        %335 = vmatprep.subr.bf16.mxu0 0
        %336 = vmatpush1.bf16.msra.mxu0 %v316
        %337 = vmatprep.subr.bf16.mxu0 0
        %338 = vmatpush1.bf16.msra.mxu0 %v317
        %339 = vmatprep.subr.bf16.mxu0 0
        %340 = vmatpush1.bf16.msra.mxu0 %v318
        %341 = vmatprep.subr.bf16.mxu0 0
        %342 = vmatpush1.bf16.msra.mxu0 %v319
        %343 = vmatprep.subr.bf16.mxu0 0
        %344 = vmatpush1.bf16.msra.mxu0 %v320
        %345 = vmatprep.subr.bf16.mxu0 0
        %346 = vmatpush1.bf16.msra.mxu0 0
        %347 = vmatprep.subr.bf16.mxu0 0
        %348 = vmatpush1.bf16.msra.mxu0 0
        %349 = vmatprep.subr.bf16.mxu0 0
        %350 = vmatpush1.bf16.msra.mxu0 0
        %351 = vmatprep.subr.bf16.mxu0 0
        %352 = vmatpush1.bf16.msra.mxu0 0
        %353 = vmatprep.subr.bf16.mxu0 0
        %354 = vmatpush1.bf16.msra.mxu0 0
        %355 = vmatprep.subr.bf16.mxu0 0
        %356 = vmatpush1.bf16.msra.mxu0 0
        %357 = vmatprep.subr.bf16.mxu0 0
        %358 = vmatpush1.bf16.msra.mxu0 0
        %359 = vmatprep.subr.bf16.mxu0 0
        %360 = vmatpush1.bf16.msra.mxu0 0
        %361 = vmatprep.mubr.bf16.mxu0 0
        %362 = vmatmul.mubr.bf16.gmra.mrb[0].mxu0 %v264
        %v363 = vpop.f32.mrb[0].mxu0
        %v364 = vadd.f32 0.0, %v363
        %v365 = vpop.f32.mrb[0].mxu0
        %v366 = vpop.f32.mrb[0].mxu0
        %v367 = vpop.f32.mrb[0].mxu0
        %368 = vdwg.mxu0
        %p369 = scmp.eq.s32.totalorder %s24, 0
        // Predicated region
        $region45: #{mlp_forward.1} parent=43 // pred_check
          %p370 = pneg %p369
        $region46: #{mlp_forward.1} parent=43 // pred_check_branch
          %372 = sbr.rel (%p370) target = $region48
        $region47: #{mlp_forward.1} parent=43 // pred_region
          %p373 = scmp.eq.s32.totalorder %s25, 0
          // Predicated region
          $region49: #{mlp_forward.1} parent=47 // pred_check
            %p374 = pneg %p373
          $region50: #{mlp_forward.1} parent=47 // pred_check_branch
            %376 = sbr.rel (%p374) target = $region52
          $region51: #{mlp_forward.1} parent=47 // pred_region
            %377 = vst [vmem:[#allocation2] sm:$0x1] 0.0
            %378 = vst [vmem:[#allocation3] sm:$0x1] 0.0
          $region52: #{mlp_forward.1} parent=47 // pred_fallthru
            _
          %v379 = vld [vmem:[#allocation2] sm:$0x1]
          %v380 = vrot.slane %v364, 4
          %v381 = vadd.f32 %v364, %v380
          %v382 = vrot.slane %v381, 2
          %v383 = vadd.f32 %v381, %v382
          %v384 = vrot.slane %v383, 1
          %v385 = vadd.f32 %v383, %v384
          %v386 = vadd.f32 %v379, %v385
          %387 = vst [vmem:[#allocation2] sm:$0x1] %v386
          %v388 = vld [vmem:[#allocation3] sm:$0x1]
          %v389 = vmul.f32 %v364, %v364
          %v390 = vrot.slane %v389, 4
          %v391 = vadd.f32 %v389, %v390
          %v392 = vrot.slane %v391, 2
          %v393 = vadd.f32 %v391, %v392
          %v394 = vrot.slane %v393, 1
          %v395 = vadd.f32 %v393, %v394
          %v396 = vadd.f32 %v388, %v395
          %397 = vst [vmem:[#allocation3] sm:$0x1] %v396
        $region48: #{mlp_forward.1} parent=43 // pred_fallthru
          _
        %p398 = scmp.eq.s32.totalorder %s24, 1
        // Predicated region
        $region53: #{mlp_forward.1} parent=43 // pred_check
          %p399 = pneg %p398
        $region54: #{mlp_forward.1} parent=43 // pred_check_branch
          %401 = sbr.rel (%p399) target = $region56
        $region55: #{mlp_forward.1} parent=43 // pred_region
          %p402 = scmp.eq.s32.totalorder %s25, 0
          // Predicated region
          $region57: #{mlp_forward.1} parent=55 // pred_check
            %p403 = pneg %p402
          $region58: #{mlp_forward.1} parent=55 // pred_check_branch
            %405 = sbr.rel (%p403) target = $region60
          $region59: #{mlp_forward.1} parent=55 // pred_region
            %v406 = vld [vmem:[#allocation2] sm:$0x1]
            %v407 = vmul.f32 %v406, 0.125
            %v408 = vld [vmem:[#allocation3] sm:$0x1]
            %v409 = vmul.f32 %v408, 0.125
            %v410 = vmul.f32 %v407, %v407
            %v411 = vsub.f32 %v409, %v410
            %v412 = vmax.f32 %v411, 0.0
            %v413 = vld [vmem:[%s2] sm:$0x1]
            %v414 = vadd.f32 %v412, 1e-05
            %v415 = vrsqrt.pop %v414
            %v416 = vmul.f32 %v413, %v415
            %417 = vst [vmem:[#allocation4] sm:$0x1] %v416
            %v418 = vld [vmem:[%s3] sm:$0x1]
            %v419 = vmul.f32 %v407, %v416
            %v420 = vsub.f32 %v418, %v419
            %421 = vst [vmem:[#allocation5] sm:$0x1] %v420
          $region60: #{mlp_forward.1} parent=55 // pred_fallthru
            _
          %v422 = vld [vmem:[#allocation4] sm:$0x1]
          %v424 = vlaneseq
          %v425 = vshrl.u32 %v424, 7
          %v426 = vsub.s32 0, %v425
          %v427 = vrot.slane %v422, %v426
          %v429 = vmul.f32 %v364, %v427
          %v430 = vld [vmem:[#allocation5] sm:$0x1]
          %v432 = vlaneseq
          %v433 = vshrl.u32 %v432, 7
          %v434 = vsub.s32 0, %v433
          %v435 = vrot.slane %v430, %v434
          %v437 = vadd.f32 %v429, %v435
          %vm438 = vcmp.ge.f32.partialorder %v437, 0.0
          %v439 = vmul.f32 %v437, 0.2
          %v440 = vsel %vm438, %v437, %v439
          %v441 = vpack.c.bf16 %v440, %v440
          %v442 = vld [vmem:[%s4] sm:$0xf]
          %v443 = vld [vmem:[%s4 + $0x4] sm:$0xf]
          %v444 = vld [vmem:[%s4 + $0x8] sm:$0xf]
          %v445 = vld [vmem:[%s4 + $0xc] sm:$0xf]
          %v446 = vld [vmem:[%s4 + $0x10] sm:$0xf]
          %v447 = vld [vmem:[%s4 + $0x14] sm:$0xf]
          %v448 = vld [vmem:[%s4 + $0x18] sm:$0xf]
          %v449 = vld [vmem:[%s4 + $0x1c] sm:$0xf]
          %v450 = vld [vmem:[%s4 + $0x20] sm:$0xf]
          %v451 = vld [vmem:[%s4 + $0x24] sm:$0xf]
          %v452 = vld [vmem:[%s4 + $0x28] sm:$0xf]
          %v453 = vld [vmem:[%s4 + $0x2c] sm:$0xf]
          %v454 = vld [vmem:[%s4 + $0x30] sm:$0xf]
          %v455 = vld [vmem:[%s4 + $0x34] sm:$0xf]
          %v456 = vld [vmem:[%s4 + $0x38] sm:$0xf]
          %v457 = vld [vmem:[%s4 + $0x3c] sm:$0xf]
          %v458 = vld [vmem:[%s5] sm:$0x1]
          %v460 = vlaneseq
          %v461 = vshrl.u32 %v460, 7
          %v462 = vsub.s32 0, %v461
          %v463 = vrot.slane %v458, %v462
          %v481 = vunpack.c.l.b16 %v442
          %v482 = vunpack.c.l.b16 %v443
          %v483 = vunpack.c.l.b16 %v444
          %v484 = vunpack.c.l.b16 %v445
          %v485 = vunpack.c.l.b16 %v446
          %v486 = vunpack.c.l.b16 %v447
          %v487 = vunpack.c.l.b16 %v448
          %v488 = vunpack.c.l.b16 %v449
          %v489 = vunpack.c.l.b16 %v450
          %v490 = vunpack.c.l.b16 %v451
          %v491 = vunpack.c.l.b16 %v452
          %v492 = vunpack.c.l.b16 %v453
          %v493 = vunpack.c.l.b16 %v454
          %v494 = vunpack.c.l.b16 %v455
          %v495 = vunpack.c.l.b16 %v456
          %v496 = vunpack.c.l.b16 %v457
          %v497 = vpack.c.b16 %v482, %v481
          %v498 = vpack.c.b16 %v484, %v483
          %v499 = vpack.c.b16 %v486, %v485
          %v500 = vpack.c.b16 %v488, %v487
          %v501 = vpack.c.b16 %v490, %v489
          %v502 = vpack.c.b16 %v492, %v491
          %v503 = vpack.c.b16 %v494, %v493
          %v504 = vpack.c.b16 %v496, %v495
          %513 = vmatprep.subr.bf16.mxu0 0
          %514 = vmatpush1.bf16.msra.mxu0 %v497
          %515 = vmatprep.subr.bf16.mxu0 0
          %516 = vmatpush1.bf16.msra.mxu0 %v498
          %517 = vmatprep.subr.bf16.mxu0 0
          %518 = vmatpush1.bf16.msra.mxu0 %v499
          %519 = vmatprep.subr.bf16.mxu0 0
          %520 = vmatpush1.bf16.msra.mxu0 %v500
          %521 = vmatprep.subr.bf16.mxu0 0
          %522 = vmatpush1.bf16.msra.mxu0 %v501
          %523 = vmatprep.subr.bf16.mxu0 0
          %524 = vmatpush1.bf16.msra.mxu0 %v502
          %525 = vmatprep.subr.bf16.mxu0 0
          %526 = vmatpush1.bf16.msra.mxu0 %v503
          %527 = vmatprep.subr.bf16.mxu0 0
          %528 = vmatpush1.bf16.msra.mxu0 %v504
          %529 = vmatprep.subr.bf16.mxu0 0
          %530 = vmatpush1.bf16.msra.mxu0 0
          %531 = vmatprep.subr.bf16.mxu0 0
          %532 = vmatpush1.bf16.msra.mxu0 0
          %533 = vmatprep.subr.bf16.mxu0 0
          %534 = vmatpush1.bf16.msra.mxu0 0
          %535 = vmatprep.subr.bf16.mxu0 0
          %536 = vmatpush1.bf16.msra.mxu0 0
          %537 = vmatprep.subr.bf16.mxu0 0
          %538 = vmatpush1.bf16.msra.mxu0 0
          %539 = vmatprep.subr.bf16.mxu0 0
          %540 = vmatpush1.bf16.msra.mxu0 0
          %541 = vmatprep.subr.bf16.mxu0 0
          %542 = vmatpush1.bf16.msra.mxu0 0
          %543 = vmatprep.subr.bf16.mxu0 0
          %544 = vmatpush1.bf16.msra.mxu0 0
          %545 = vmatprep.mubr.bf16.mxu0 0
          %546 = vmatmul.mubr.bf16.gmra.mrb[0].mxu0 %v441
          %v547 = vpop.f32.mrb[0].mxu0
          %v548 = vadd.f32 %v463, %v547
          %v549 = vpop.f32.mrb[0].mxu0
          %v550 = vpop.f32.mrb[0].mxu0
          %v551 = vpop.f32.mrb[0].mxu0
          %552 = vdwg.mxu0
          %553 = vst [vmem:[%s256] sm:$0xff] %v548
        $region56: #{mlp_forward.1} parent=43 // pred_fallthru
          _
        %s554 = sand.u32 %s173, 1
        %s555 = scalar_lea.sflag [#allocation7], %s554
        %s556 = sand.u32 %s173, 1
        %s557 = smul.addr %s556, 8
        %s558 = scalar_lea.vmem [#allocation6], %s557
        // Predicated region
        $region61: #{mlp_forward.1} parent=43 // pred_check
          %p559 = pneg %p183
        $region62: #{mlp_forward.1} parent=43 // pred_check_branch
          %561 = sbr.rel (%p559) target = $region64
        $region63: #{mlp_forward.1} parent=43 // pred_region
          %s562 = smul.u32 %s24, %s25
          %s564 = ssub.s32 128, 128
          %565 = vsyncadd %s555, %s564
          %s566 = smul.addr %s562, 128
          %s567 = scalar_lea.hbm %s6, %s566
          %s569 = sshll.u32 %s558, 4
          %s570 = int_to_ptr.vmem [resolvable:$true] %s569
          %572 = dma.vmem_to_hbm [thread:$0]  %s570, 128, %s567, %s555
        $region64: #{mlp_forward.1} parent=43 // pred_fallthru
          _
      $region44: #{mlp_forward.1} parent=5 // pred_fallthru
        _
      %p573 = scmp.le.s32.totalorder 2, %s15
      // Predicated region
      $region65: #{mlp_forward.1} parent=5 // pred_check
        %p574 = pneg %p573
      $region66: #{mlp_forward.1} parent=5 // pred_check_branch
        %576 = sbr.rel (%p574) target = $region68
      $region67: #{mlp_forward.1} parent=5 // pred_region
        %s577 = ssub.s32 %s15, 2
        // Predicated region
        $region69: #{mlp_forward.1} parent=67 // pred_check
          %p578 = pneg %p189
        $region70: #{mlp_forward.1} parent=67 // pred_check_branch
          %580 = sbr.rel (%p578) target = $region72
        $region71: #{mlp_forward.1} parent=67 // pred_region
          %s581 = sand.u32 %s174, 1
          %s582 = scalar_lea.sflag [#allocation7], %s581
          %s583 = sand.u32 %s174, 1
          %s584 = smul.addr %s583, 8
          %s585 = scalar_lea.vmem [#allocation6], %s584
          %586 = dma.done %s582, 128
        $region72: #{mlp_forward.1} parent=67 // pred_fallthru
          _
      $region68: #{mlp_forward.1} parent=5 // pred_fallthru
        _
    $region6: #{mlp_forward.1} parent=1 // loop_footer
      %s19 = sadd.s32 1, %s15
    $region7: #{mlp_forward.1} parent=1 // loop_footer_branch
      %14 = sbr.rel target = $region3
    $region8: #{mlp_forward.1} parent=1 // loop_exit
      _
    %587 = vsyncpa [#allocation7], 1
    %s588 = scalar_lea.sflag [#allocation7], 1
    %589 = vsyncpa %s588, 1

</llo_original>
